<compile_context>
chip_gen: v6e
topology: v6e:2x2x1
jax: 0.10.0
libtpu: 0.0.40
codegen_flags: <defaults>
</compile_context>

<pallas_src>
import jax
import jax.numpy as jnp
from jax.experimental import pallas as pl
from jax.experimental.pallas import tpu as pltpu


def _dwt_haar_kernel(x_ref, m_ref, out_ref):
    # x_ref:   (TH, W)        one row-tile of one plane (leading dim squeezed)
    # m_ref:   (W, W)         constant analysis matrix [Lo | Hi], ±0.5 entries
    # out_ref: (2, TH//2, W)  packed output: [ll | hl] at 0, [lh | hh] at 1
    h2 = x_ref.shape[0] // 2

    # Row (sublane) decimation via cheap strided loads — no reshape.
    x_even = x_ref[pl.ds(0, h2, stride=2), :].astype(jnp.float32)
    x_odd = x_ref[pl.ds(1, h2, stride=2), :].astype(jnp.float32)
    r_lo = x_even + x_odd          # (TH//2, W)
    r_hi = x_even - x_odd          # (TH//2, W)

    m = m_ref[...]
    # Column (lane) decimation on the MXU: lane-dense [low | high] slabs.
    out_ref[0] = jnp.dot(r_lo, m, preferred_element_type=jnp.float32,
                         precision=jax.lax.Precision.HIGHEST)
    out_ref[1] = jnp.dot(r_hi, m, preferred_element_type=jnp.float32,
                         precision=jax.lax.Precision.HIGHEST)


def _pick_tile_h(H, W, max_elems=512 * 1024):
    """Largest TH that divides H, is a multiple of 16 (so TH//2 obeys the
    8-sublane rule) and keeps per-step VMEM (~16*TH*W bytes with double
    buffering) bounded.  Falls back to full-H blocks for small/odd H."""
    best = None
    for th in range(16, H + 1, 16):
        if H % th == 0 and th * W <= max_elems:
            best = th
    if best is None:
        best = 16 if H % 16 == 0 else H
    return best


def _analysis_matrix(W):
    """(W, W) Haar column-analysis matrix M = [Lo | Hi], entries in {0, ±0.5}.
    (r @ M)[:, :W//2] is the column low-pass, [:, W//2:] the high-pass."""
    Wq = W // 2
    r = jnp.arange(W)[:, None]
    c = jnp.arange(W)[None, :]
    k = jnp.where(c < Wq, c, c - Wq)
    sign = jnp.where((c >= Wq) & (r % 2 == 1), -1.0, 1.0)
    return jnp.where((r // 2) == k, 0.5 * sign, 0.0).astype(jnp.float32)


def dwt_haar(x, wave_type="haar"):
    """JAX/Pallas equivalent of DWT.forward: returns (ll, lh, hl, hh), f32."""
    assert wave_type == "haar"
    B, C, H, W = x.shape
    assert H % 2 == 0 and W % 2 == 0
    Wq = W // 2

    xf = x.reshape(B * C, H, W)
    m = _analysis_matrix(W)
    th = _pick_tile_h(H, W)
    grid = (B * C, H // th)

    packed = pl.pallas_call(
        _dwt_haar_kernel,
        out_shape=jax.ShapeDtypeStruct((B * C, 2, H // 2, W), jnp.float32),
        grid_spec=pltpu.PrefetchScalarGridSpec(
            num_scalar_prefetch=0,
            grid=grid,
            in_specs=[
                # One row-tile of one plane per grid step (leading dim squeezed).
                pl.BlockSpec((None, th, W), lambda i, r: (i, r, 0)),
                # Constant analysis matrix: same block every step (stays in VMEM).
                pl.BlockSpec((W, W), lambda i, r: (0, 0)),
            ],
            # Single merged, lane-dense output stream.
            out_specs=pl.BlockSpec((None, 2, th // 2, W),
                                   lambda i, r: (i, 0, r, 0)),
        ),
        compiler_params=pltpu.CompilerParams(
            dimension_semantics=("parallel", "parallel")),
    )(xf, m)

    packed = packed.reshape(B, C, 2, H // 2, W)
    ll = packed[:, :, 0, :, :Wq]
    hl = packed[:, :, 0, :, Wq:]
    lh = packed[:, :, 1, :, :Wq]
    hh = packed[:, :, 1, :, Wq:]
    return ll, lh, hl, hh


def _reference_dwt_haar(x):
    """Plain-JAX reference of the same math, for verification."""
    a = x[..., 0::2, 0::2].astype(jnp.float32)
    b = x[..., 0::2, 1::2].astype(jnp.float32)
    c = x[..., 1::2, 0::2].astype(jnp.float32)
    d = x[..., 1::2, 1::2].astype(jnp.float32)
    return (
        (a + b + c + d) * 0.5,
        (a + b - c - d) * 0.5,
        (a - b + c - d) * 0.5,
        (a - b - c + d) * 0.5,
    )


if __name__ == "__main__":
    key = jax.random.PRNGKey(0)
    B, C, H, W = 2, 4, 16, 16
    x = jax.random.normal(key, (B, C, H, W), dtype=jnp.float32)

    ll, lh, hl, hh = dwt_haar(x)
    jax.block_until_ready((ll, lh, hl, hh))

    ll_r, lh_r, hl_r, hh_r = _reference_dwt_haar(x)
    for got, want in ((ll, ll_r), (lh, lh_r), (hl, hl_r), (hh, hh_r)):
        assert got.shape == (B, C, H // 2, W // 2)
        assert got.dtype == jnp.float32
        assert jnp.max(jnp.abs(got - want)) < 1e-5

    print("KERNEL_OK")
</pallas_src>

<mosaic_0001>
module attributes {stable_mosaic.version = 11 : i64} {
  func.func @_dwt_haar_kernel(%arg0: i32, %arg1: i32, %arg2: memref<1x16x16xf32, #tpu.memory_space<vmem>>, %arg3: memref<16x16xf32, #tpu.memory_space<vmem>>, %arg4: memref<1x2x8x16xf32, #tpu.memory_space<vmem>>) attributes {dimension_semantics = [#tpu.dimension_semantics<parallel>, #tpu.dimension_semantics<parallel>], iteration_bounds = array<i64: 8, 1>, scalar_prefetch = 0 : i64, scratch_operands = 0 : i64, tpu.core_type = #tpu.core_type<tc>, window_params = [{transform_indices = @transform_0, window_bounds = array<i64: 1, 16, 16>}, {pipeline_mode = #tpu.pipeline_mode<synchronous>, transform_indices = @transform_1, window_bounds = array<i64: 16, 16>}, {transform_indices = @transform_2, window_bounds = array<i64: 1, 2, 8, 16>}]} {
    %c0 = arith.constant 0 : index
    %c0_0 = arith.constant 0 : index
    %c0_1 = arith.constant 0 : index
    %0 = tpu.strided_load %arg2[%c0, %c0_0, %c0_1] {strides = array<i32: 1, 2, 1>} : memref<1x16x16xf32, #tpu.memory_space<vmem>>, vector<1x8x16xf32>
    %1 = vector.shape_cast %0 : vector<1x8x16xf32> to vector<8x16xf32>
    %c0_2 = arith.constant 0 : index
    %c1 = arith.constant 1 : index
    %c0_3 = arith.constant 0 : index
    %2 = tpu.strided_load %arg2[%c0_2, %c1, %c0_3] {strides = array<i32: 1, 2, 1>} : memref<1x16x16xf32, #tpu.memory_space<vmem>>, vector<1x8x16xf32>
    %3 = vector.shape_cast %2 : vector<1x8x16xf32> to vector<8x16xf32>
    %4 = arith.addf %1, %3 : vector<8x16xf32>
    %5 = arith.subf %1, %3 : vector<8x16xf32>
    %c0_4 = arith.constant 0 : index
    %c0_5 = arith.constant 0 : index
    %6 = vector.load %arg3[%c0_4, %c0_5] : memref<16x16xf32, #tpu.memory_space<vmem>>, vector<16x16xf32>
    %cst = arith.constant dense<0.000000e+00> : vector<8x16xf32>
    %7 = tpu.matmul %4, %6, %cst {dimension_numbers = #tpu.dot_dimension_numbers<[1], [0], [0], [1], [0, 0, 1, 1], [], []>, precision = #tpu.contract_precision<fp32>} : vector<8x16xf32>, vector<16x16xf32>, vector<8x16xf32> -> vector<8x16xf32>
    %c0_6 = arith.constant 0 : index
    %c0_7 = arith.constant 0 : index
    %c0_8 = arith.constant 0 : index
    %c0_9 = arith.constant 0 : index
    %8 = vector.load %arg4[%c0_6, %c0_7, %c0_8, %c0_9] : memref<1x2x8x16xf32, #tpu.memory_space<vmem>>, vector<1x1x8x16xf32>
    %9 = vector.shape_cast %8 : vector<1x1x8x16xf32> to vector<8x16xf32>
    %10 = vector.shape_cast %7 : vector<8x16xf32> to vector<1x1x8x16xf32>
    tpu.vector_store %arg4[%c0_6, %c0_7, %c0_8, %c0_9], %10 {strides = array<i32>} : memref<1x2x8x16xf32, #tpu.memory_space<vmem>>, vector<1x1x8x16xf32>,
    %cst_10 = arith.constant dense<0.000000e+00> : vector<8x16xf32>
    %11 = tpu.matmul %5, %6, %cst_10 {dimension_numbers = #tpu.dot_dimension_numbers<[1], [0], [0], [1], [0, 0, 1, 1], [], []>, precision = #tpu.contract_precision<fp32>} : vector<8x16xf32>, vector<16x16xf32>, vector<8x16xf32> -> vector<8x16xf32>
    %c0_11 = arith.constant 0 : index
    %c1_12 = arith.constant 1 : index
    %c0_13 = arith.constant 0 : index
    %c0_14 = arith.constant 0 : index
    %12 = vector.load %arg4[%c0_11, %c1_12, %c0_13, %c0_14] : memref<1x2x8x16xf32, #tpu.memory_space<vmem>>, vector<1x1x8x16xf32>
    %13 = vector.shape_cast %12 : vector<1x1x8x16xf32> to vector<8x16xf32>
    %14 = vector.shape_cast %11 : vector<8x16xf32> to vector<1x1x8x16xf32>
    tpu.vector_store %arg4[%c0_11, %c1_12, %c0_13, %c0_14], %14 {strides = array<i32>} : memref<1x2x8x16xf32, #tpu.memory_space<vmem>>, vector<1x1x8x16xf32>,
    return
  }
  func.func @transform_0(%arg0: i32, %arg1: i32) -> (i32, i32, i32) {
    %c0_i32 = arith.constant 0 : i32
    %c0_i32_0 = arith.constant 0 : i32
    return %arg0, %arg1, %c0_i32 : i32, i32, i32
  }
  func.func @transform_1(%arg0: i32, %arg1: i32) -> (i32, i32) {
    %c0_i32 = arith.constant 0 : i32
    %c0_i32_0 = arith.constant 0 : i32
    %c0_i32_1 = arith.constant 0 : i32
    return %c0_i32, %c0_i32_0 : i32, i32
  }
  func.func @transform_2(%arg0: i32, %arg1: i32) -> (i32, i32, i32, i32) {
    %c0_i32 = arith.constant 0 : i32
    %c0_i32_0 = arith.constant 0 : i32
    %c0_i32_1 = arith.constant 0 : i32
    return %arg0, %c0_i32, %arg1, %c0_i32_0 : i32, i32, i32, i32
  }
}

</mosaic_0001>

<llo_original>
// kernel: tpu_custom_call.1
$region0: #{tpu_custom_call.1}
  #allocation0 [shape = 'u32[]', space=smem, size = 0x4, offset = 0x4, fixed_abs, tag = 'smem constant byte address 0x4 - core index']
  #allocation1 [shape = 'u32[144,128]{1,0:T(1,128)}', space=vmem, size = 0x12000, scoped, tag = 'internal scratch']
  %s0 = inlined_call_operand.hbm [shape: f32[8,16,16], index: 0, kind: input, shape index: {}]
  %s1 = inlined_call_operand.hbm [shape: f32[16,16], index: 1, kind: input, shape index: {}]
  %s2 = inlined_call_operand.hbm [shape: f32[8,2,8,16], index: 2, kind: output, shape index: {}]
  %s3 = sld [smem:[#allocation0]]
  $region49: #{tpu_custom_call.1} parent=0
    _
  %s5 = ssub.s32 1, %s3
  %s6 = scalar_select 0, %s5, %s3
  $region1: #{tpu_custom_call.1} parent=0
    #allocation2 [shape = 'u8[16384]{0}', space=vmem, size = 0x4000, scoped, tag = 'input window, operand 0']
    #allocation3 [shape = 's32[2]{0}', space=sflag, size = 0x8, scoped, tag = 'scoped memory for tpu_custom_call.1']
    #allocation4 [shape = 's32[2]{0}', space=sflag, size = 0x8, scoped, tag = 'scoped memory for tpu_custom_call.1']
    #allocation5 [shape = 'u8[8192]{0}', space=vmem, size = 0x2000, scoped, tag = 'input window, operand 1, single buffered']
    #allocation6 [shape = 's32[1]{0}', space=sflag, size = 0x4, scoped, tag = 'scoped memory for tpu_custom_call.1']
    #allocation7 [shape = 'u8[16384]{0}', space=vmem, size = 0x4000, scoped, tag = 'output window, operand 0']
    %7 = vsyncpa [#allocation3], 0
    %s8 = scalar_lea.sflag [#allocation3], 1
    %9 = vsyncpa %s8, 0
    %10 = vsyncpa [#allocation6], 0
    %11 = vsyncpa [#allocation4], 0
    %s12 = scalar_lea.sflag [#allocation4], 1
    %13 = vsyncpa %s12, 0
    loop: start=0, step=1, limit=10
    $region2: #{tpu_custom_call.1} parent=1 // loop_pre_header
      _
    $region3: #{tpu_custom_call.1} parent=1 // loop_header
      %s15 = sphi 0, %s19
      %p16 = scmp.ge.s32.totalorder %s15, 10
      %s22 = sphi 0, %s34
      %s23 = sphi 0, %s30
      %s24 = sphi 0, %s22
      %s25 = sphi 0, %s23
      %s26 = sphi 0, %s24
      %s27 = sphi 0, %s25
      %s39 = sphi 0, %s41
      %s42 = sphi 0, %s39
      %s43 = sphi 0, %s42
      %s59 = sphi 0, %s43
      %s63 = sphi 0, %s63
      %s65 = sphi 0, %s63
      %s66 = sphi 0, %s65
      %s80 = sphi 0, %s66
      %s88 = sphi 0, %s90
      %s91 = sphi 0, %s88
      %s92 = sphi 0, %s91
      %s108 = sphi 0, %s92
    $region4: #{tpu_custom_call.1} parent=1 // loop_header_branch
      %18 = sbr.rel (%p16) target = $region8
    $region5: #{tpu_custom_call.1} parent=1 // loop_body
      %s20 = ssub.s32 %s15, 1
      %s21 = ssub.s32 %s15, 2
      %s28 = sadd.s32 1, %s23
      %p29 = scmp.ge.s32.totalorder %s28, 1
      %s30 = scalar_select %p29, 0, %s28
      %s31 = sadd.s32 1, %s22
      %s32 = scalar_select %p29, %s31, %s22
      %p33 = scmp.ge.s32.totalorder %s32, 8
      %s34 = scalar_select %p33, 0, %s32
      %s35 = ssub.s32 %s22, %s34
      %s36 = ssub.s32 %s23, %s30
      %s37 = sor.u32 %s35, %s36
      %p38 = scmp.eq.s32.totalorder %s37, 0
      %s40 = sadd.s32 %s39, 1
      %s41 = scalar_select %p38, %s39, %s40
      %p44 = pneg %p38
      %p45 = scmp.eq.s32.totalorder %s15, 7
      %p46 = por %p44, %p45
      %p47 = scmp.ne.s32.totalorder %s39, %s42
      %p48 = scmp.eq.s32.totalorder %s15, 0
      %p49 = por %p47, %p48
      %p50 = scmp.ne.s32.totalorder %s39, %s42
      %p51 = scmp.eq.s32.totalorder %s20, 7
      %p52 = por %p50, %p51
      %p53 = scmp.ne.s32.totalorder %s42, %s43
      %p54 = scmp.eq.s32.totalorder %s20, 0
      %p55 = por %p53, %p54
      %p56 = scmp.ne.s32.totalorder %s42, %s43
      %p57 = scmp.eq.s32.totalorder %s21, 7
      %p58 = por %p56, %p57
      %p60 = scmp.ne.s32.totalorder %s43, %s59
      %p61 = scmp.eq.s32.totalorder %s21, 0
      %p62 = por %p60, %p61
      %s64 = sadd.s32 %s63, 1
      %p67 = scmp.eq.s32.totalorder %s15, 7
      %p68 = scmp.ne.s32.totalorder %s63, %s65
      %p69 = scmp.eq.s32.totalorder %s15, 0
      %p70 = por %p68, %p69
      %p71 = scmp.ne.s32.totalorder %s63, %s65
      %p72 = scmp.eq.s32.totalorder %s20, 7
      %p73 = por %p71, %p72
      %p74 = scmp.ne.s32.totalorder %s65, %s66
      %p75 = scmp.eq.s32.totalorder %s20, 0
      %p76 = por %p74, %p75
      %p77 = scmp.ne.s32.totalorder %s65, %s66
      %p78 = scmp.eq.s32.totalorder %s21, 7
      %p79 = por %p77, %p78
      %p81 = scmp.ne.s32.totalorder %s66, %s80
      %p82 = scmp.eq.s32.totalorder %s21, 0
      %p83 = por %p81, %p82
      %s84 = ssub.s32 %s22, %s34
      %s85 = ssub.s32 %s23, %s30
      %s86 = sor.u32 %s84, %s85
      %p87 = scmp.eq.s32.totalorder %s86, 0
      %s89 = sadd.s32 %s88, 1
      %s90 = scalar_select %p87, %s88, %s89
      %p93 = pneg %p87
      %p94 = scmp.eq.s32.totalorder %s15, 7
      %p95 = por %p93, %p94
      %p96 = scmp.ne.s32.totalorder %s88, %s91
      %p97 = scmp.eq.s32.totalorder %s15, 0
      %p98 = por %p96, %p97
      %p99 = scmp.ne.s32.totalorder %s88, %s91
      %p100 = scmp.eq.s32.totalorder %s20, 7
      %p101 = por %p99, %p100
      %p102 = scmp.ne.s32.totalorder %s91, %s92
      %p103 = scmp.eq.s32.totalorder %s20, 0
      %p104 = por %p102, %p103
      %p105 = scmp.ne.s32.totalorder %s91, %s92
      %p106 = scmp.eq.s32.totalorder %s21, 7
      %p107 = por %p105, %p106
      %p109 = scmp.ne.s32.totalorder %s92, %s108
      %p110 = scmp.eq.s32.totalorder %s21, 0
      %p111 = por %p109, %p110
      %p112 = scmp.le.s32.totalorder 1, %s15
      %p113 = scmp.lt.s32.totalorder %s15, 9
      %p114 = pnand %p112, %p113
      %p115 = pneg %p114
      // Predicated region
      $region9: #{tpu_custom_call.1} parent=5 // pred_check
        _
      $region10: #{tpu_custom_call.1} parent=5 // pred_check_branch
        %117 = sbr.rel (%p114) target = $region12
      $region11: #{tpu_custom_call.1} parent=5 // pred_region
        %s118 = ssub.s32 %s15, 1
        // Predicated region
        $region13: #{tpu_custom_call.1} parent=11 // pred_check
          %p119 = pneg %p76
        $region14: #{tpu_custom_call.1} parent=11 // pred_check_branch
          %121 = sbr.rel (%p119) target = $region16
        $region15: #{tpu_custom_call.1} parent=11 // pred_region
          %s123 = ssub.s32 256, 256
          %124 = vsyncadd [#allocation6], %s123
          %s125 = sshll.u32 [#allocation5], 4
          %s126 = int_to_ptr.vmem [resolvable:$true] %s125
          %131 = dma.hbm_to_vmem [thread:$0]  %s1, 256, %s126, [#allocation6], 128, 128, 8
        $region16: #{tpu_custom_call.1} parent=11 // pred_fallthru
          _
      $region12: #{tpu_custom_call.1} parent=5 // pred_fallthru
        _
      %p132 = scmp.lt.s32.totalorder %s15, 8
      // Predicated region
      $region17: #{tpu_custom_call.1} parent=5 // pred_check
        %p133 = pneg %p132
      $region18: #{tpu_custom_call.1} parent=5 // pred_check_branch
        %135 = sbr.rel (%p133) target = $region20
      $region19: #{tpu_custom_call.1} parent=5 // pred_region
        // Predicated region
        $region21: #{tpu_custom_call.1} parent=19 // pred_check
          %p136 = pneg %p49
        $region22: #{tpu_custom_call.1} parent=19 // pred_check_branch
          %138 = sbr.rel (%p136) target = $region24
        $region23: #{tpu_custom_call.1} parent=19 // pred_region
          %s139 = sand.u32 %s39, 1
          %s140 = scalar_lea.sflag [#allocation3], %s139
          %s141 = sand.u32 %s39, 1
          %s142 = smul.addr %s141, 16
          %s143 = scalar_lea.vmem [#allocation2], %s142
          %s144 = smul.u32 2, %s23
          %s146 = ssub.s32 256, 256
          %147 = vsyncadd %s140, %s146
          %s148 = smul.addr %s22, 2
          %s149 = sadd.s32 %s144, %s148
          %s150 = smul.addr %s149, 128
          %s151 = scalar_lea.hbm %s0, %s150
          %s152 = sshll.u32 %s143, 4
          %s153 = int_to_ptr.vmem [resolvable:$true] %s152
          %158 = dma.hbm_to_vmem [thread:$0]  %s151, 256, %s153, %s140, 128, 128, 8
        $region24: #{tpu_custom_call.1} parent=19 // pred_fallthru
          _
      $region20: #{tpu_custom_call.1} parent=5 // pred_fallthru
        _
      %p159 = scmp.le.s32.totalorder 1, %s15
      %p160 = scmp.lt.s32.totalorder %s15, 9
      %p161 = pnand %p159, %p160
      %p162 = pneg %p161
      // Predicated region
      $region25: #{tpu_custom_call.1} parent=5 // pred_check
        _
      $region26: #{tpu_custom_call.1} parent=5 // pred_check_branch
        %164 = sbr.rel (%p161) target = $region28
      $region27: #{tpu_custom_call.1} parent=5 // pred_region
        %s165 = ssub.s32 %s15, 1
        %s166 = sand.u32 %s42, 1
        %s167 = scalar_lea.sflag [#allocation3], %s166
        %s168 = sand.u32 %s42, 1
        %s169 = smul.addr %s168, 16
        %s170 = scalar_lea.vmem [#allocation2], %s169
        // Predicated region
        $region29: #{tpu_custom_call.1} parent=27 // pred_check
          %p171 = pneg %p55
        $region30: #{tpu_custom_call.1} parent=27 // pred_check_branch
          %173 = sbr.rel (%p171) target = $region32
        $region31: #{tpu_custom_call.1} parent=27 // pred_region
          %174 = dma.done %s167, 256
        $region32: #{tpu_custom_call.1} parent=27 // pred_fallthru
          _
        // Predicated region
        $region33: #{tpu_custom_call.1} parent=27 // pred_check
          %p175 = pneg %p76
        $region34: #{tpu_custom_call.1} parent=27 // pred_check_branch
          %177 = sbr.rel (%p175) target = $region36
        $region35: #{tpu_custom_call.1} parent=27 // pred_region
          %178 = dma.done [#allocation6], 256
        $region36: #{tpu_custom_call.1} parent=27 // pred_fallthru
          _
        %s179 = sand.u32 %s42, 1
        %s180 = scalar_lea.sflag [#allocation3], %s179
        %s181 = sand.u32 %s42, 1
        %s182 = smul.addr %s181, 16
        %s183 = scalar_lea.vmem [#allocation2], %s182
        %p184 = pneg %p55
        %p185 = pneg %p52
        %p186 = pneg %p76
        %p187 = pneg %p73
        %p188 = pneg %p104
        %p189 = pneg %p101
        %s190 = sand.u32 %s91, 1
        %s191 = scalar_lea.sflag [#allocation4], %s190
        %s192 = sand.u32 %s91, 1
        %s193 = smul.addr %s192, 16
        %s194 = scalar_lea.vmem [#allocation7], %s193
        %s195 = smul.u32 2, %s25
        %v196 = vld [vmem:[%s170] ss:$2 sm:$0xff]
        %s197 = scalar_lea.vmem %s170, 1 [#allocation2]
        %v198 = vld [vmem:[%s197] ss:$2 sm:$0xff]
        %v199 = vadd.f32 %v196, %v198
        %v200 = vsub.f32 %v196, %v198
        %v201 = vld [vmem:[#allocation5] sm:$0xff]
        %v202 = vld [vmem:[#allocation5 + $0x8] sm:$0xff]
        %vm203 = vcmask 130048
        %v205 = vsel %vm203, %v199, 0
        %207 = vmatprep.subr.mxu0 0.0
        %208 = vmatpush1.msra.mxu0 0.0
        %209 = vmatprep.subr.mxu0 0.0
        %210 = vmatpush1.msra.mxu0 0.0
        %211 = vmatprep.subr.mxu0 0.0
        %212 = vmatpush1.msra.mxu0 0.0
        %213 = vmatprep.subr.mxu0 0.0
        %214 = vmatpush1.msra.mxu0 0.0
        %215 = vmatprep.subr.mxu0 0.0
        %216 = vmatpush1.msra.mxu0 0.0
        %217 = vmatprep.subr.mxu0 0.0
        %218 = vmatpush1.msra.mxu0 0.0
        %219 = vmatprep.subr.mxu0 0.0
        %220 = vmatpush1.msra.mxu0 0.0
        %221 = vmatprep.subr.mxu0 0.0
        %222 = vmatpush1.msra.mxu0 0.0
        %223 = vmatprep.subr.mxu0 0.0
        %224 = vmatpush1.msra.mxu0 0.0
        %225 = vmatprep.subr.mxu0 0.0
        %226 = vmatpush1.msra.mxu0 0.0
        %227 = vmatprep.subr.mxu0 0.0
        %228 = vmatpush1.msra.mxu0 0.0
        %229 = vmatprep.subr.mxu0 0.0
        %230 = vmatpush1.msra.mxu0 0.0
        %231 = vmatprep.subr.mxu0 0.0
        %232 = vmatpush1.msra.mxu0 0.0
        %233 = vmatprep.subr.mxu0 0.0
        %234 = vmatpush1.msra.mxu0 0.0
        %235 = vmatprep.subr.mxu0 0.0
        %v236 = vand.u32 %v202, 4294901760
        %237 = vmatpush1.msra.mxu0 %v236
        %238 = vmatprep.subr.mxu0 0.0
        %v239 = vand.u32 %v201, 4294901760
        %240 = vmatpush1.msra.mxu0 %v239
        %241 = vmatprep.subr.mxu0 0.0
        %242 = vmatpush2.msra.mxu0 0.0
        %243 = vmatprep.subr.mxu0 0.0
        %244 = vmatpush2.msra.mxu0 0.0
        %245 = vmatprep.subr.mxu0 0.0
        %246 = vmatpush2.msra.mxu0 0.0
        %247 = vmatprep.subr.mxu0 0.0
        %248 = vmatpush2.msra.mxu0 0.0
        %249 = vmatprep.subr.mxu0 0.0
        %250 = vmatpush2.msra.mxu0 0.0
        %251 = vmatprep.subr.mxu0 0.0
        %252 = vmatpush2.msra.mxu0 0.0
        %253 = vmatprep.subr.mxu0 0.0
        %254 = vmatpush2.msra.mxu0 0.0
        %255 = vmatprep.subr.mxu0 0.0
        %256 = vmatpush2.msra.mxu0 0.0
        %257 = vmatprep.subr.mxu0 0.0
        %258 = vmatpush2.msra.mxu0 0.0
        %259 = vmatprep.subr.mxu0 0.0
        %260 = vmatpush2.msra.mxu0 0.0
        %261 = vmatprep.subr.mxu0 0.0
        %262 = vmatpush2.msra.mxu0 0.0
        %263 = vmatprep.subr.mxu0 0.0
        %264 = vmatpush2.msra.mxu0 0.0
        %265 = vmatprep.subr.mxu0 0.0
        %266 = vmatpush2.msra.mxu0 0.0
        %267 = vmatprep.subr.mxu0 0.0
        %268 = vmatpush2.msra.mxu0 0.0
        %269 = vmatprep.subr.mxu0 0.0
        %270 = vmatpush2.msra.mxu0 0.0
        %271 = vmatprep.subr.mxu0 0.0
        %272 = vmatpush2.msra.mxu0 0.0
        %273 = vmatprep.mubr.f32.mxu0 0.0
        %v274 = vand.u32 %v205, 4294901760
        %v275 = vsub.f32 %v205, %v274
        %v276 = vand.u32 %v275, 4294901760
        %v277 = vsub.f32 %v275, %v276
        %v278 = vand.u32 %v277, 4294901760
        %279 = vmatmul.mubr.f32.gmra.mxu0 %v278
        %v280 = vpop.f32.mrf.mxu0
        %v281 = vadd.f32 0.0, %v280
        %v282 = vpop.f32.mrf.mxu0
        %283 = vdwg.mxu0
        %284 = vmatprep.subr.mxu0 0.0
        %285 = vmatpush1.msra.mxu0 0.0
        %286 = vmatprep.subr.mxu0 0.0
        %287 = vmatpush1.msra.mxu0 0.0
        %288 = vmatprep.subr.mxu0 0.0
        %289 = vmatpush1.msra.mxu0 0.0
        %290 = vmatprep.subr.mxu0 0.0
        %291 = vmatpush1.msra.mxu0 0.0
        %292 = vmatprep.subr.mxu0 0.0
        %293 = vmatpush1.msra.mxu0 0.0
        %294 = vmatprep.subr.mxu0 0.0
        %295 = vmatpush1.msra.mxu0 0.0
        %296 = vmatprep.subr.mxu0 0.0
        %297 = vmatpush1.msra.mxu0 0.0
        %298 = vmatprep.subr.mxu0 0.0
        %299 = vmatpush1.msra.mxu0 0.0
        %300 = vmatprep.subr.mxu0 0.0
        %301 = vmatpush1.msra.mxu0 0.0
        %302 = vmatprep.subr.mxu0 0.0
        %303 = vmatpush1.msra.mxu0 0.0
        %304 = vmatprep.subr.mxu0 0.0
        %305 = vmatpush1.msra.mxu0 0.0
        %306 = vmatprep.subr.mxu0 0.0
        %307 = vmatpush1.msra.mxu0 0.0
        %308 = vmatprep.subr.mxu0 0.0
        %309 = vmatpush1.msra.mxu0 0.0
        %310 = vmatprep.subr.mxu0 0.0
        %311 = vmatpush1.msra.mxu0 0.0
        %312 = vmatprep.subr.mxu0 0.0
        %v313 = vand.u32 %v202, 4294901760
        %v314 = vsub.f32 %v202, %v313
        %v315 = vand.u32 %v314, 4294901760
        %v316 = vsub.f32 %v314, %v315
        %v317 = vand.u32 %v316, 4294901760
        %318 = vmatpush1.msra.mxu0 %v317
        %319 = vmatprep.subr.mxu0 0.0
        %v320 = vand.u32 %v201, 4294901760
        %v321 = vsub.f32 %v201, %v320
        %v322 = vand.u32 %v321, 4294901760
        %v323 = vsub.f32 %v321, %v322
        %v324 = vand.u32 %v323, 4294901760
        %325 = vmatpush1.msra.mxu0 %v324
        %326 = vmatprep.subr.mxu0 0.0
        %327 = vmatpush2.msra.mxu0 0.0
        %328 = vmatprep.subr.mxu0 0.0
        %329 = vmatpush2.msra.mxu0 0.0
        %330 = vmatprep.subr.mxu0 0.0
        %331 = vmatpush2.msra.mxu0 0.0
        %332 = vmatprep.subr.mxu0 0.0
        %333 = vmatpush2.msra.mxu0 0.0
        %334 = vmatprep.subr.mxu0 0.0
        %335 = vmatpush2.msra.mxu0 0.0
        %336 = vmatprep.subr.mxu0 0.0
        %337 = vmatpush2.msra.mxu0 0.0
        %338 = vmatprep.subr.mxu0 0.0
        %339 = vmatpush2.msra.mxu0 0.0
        %340 = vmatprep.subr.mxu0 0.0
        %341 = vmatpush2.msra.mxu0 0.0
        %342 = vmatprep.subr.mxu0 0.0
        %343 = vmatpush2.msra.mxu0 0.0
        %344 = vmatprep.subr.mxu0 0.0
        %345 = vmatpush2.msra.mxu0 0.0
        %346 = vmatprep.subr.mxu0 0.0
        %347 = vmatpush2.msra.mxu0 0.0
        %348 = vmatprep.subr.mxu0 0.0
        %349 = vmatpush2.msra.mxu0 0.0
        %350 = vmatprep.subr.mxu0 0.0
        %351 = vmatpush2.msra.mxu0 0.0
        %352 = vmatprep.subr.mxu0 0.0
        %353 = vmatpush2.msra.mxu0 0.0
        %354 = vmatprep.subr.mxu0 0.0
        %355 = vmatpush2.msra.mxu0 0.0
        %356 = vmatprep.subr.mxu0 0.0
        %357 = vmatpush2.msra.mxu0 0.0
        %358 = vmatprep.mubr.f32.mxu0 0.0
        %v359 = vand.u32 %v205, 4294901760
        %360 = vmatmul.mubr.f32.gmra.mxu0 %v359
        %v361 = vpop.f32.mrf.mxu0
        %v362 = vadd.f32 %v281, %v361
        %v363 = vpop.f32.mrf.mxu0
        %364 = vdwg.mxu0
        %365 = vmatprep.subr.mxu0 0.0
        %366 = vmatpush1.msra.mxu0 0.0
        %367 = vmatprep.subr.mxu0 0.0
        %368 = vmatpush1.msra.mxu0 0.0
        %369 = vmatprep.subr.mxu0 0.0
        %370 = vmatpush1.msra.mxu0 0.0
        %371 = vmatprep.subr.mxu0 0.0
        %372 = vmatpush1.msra.mxu0 0.0
        %373 = vmatprep.subr.mxu0 0.0
        %374 = vmatpush1.msra.mxu0 0.0
        %375 = vmatprep.subr.mxu0 0.0
        %376 = vmatpush1.msra.mxu0 0.0
        %377 = vmatprep.subr.mxu0 0.0
        %378 = vmatpush1.msra.mxu0 0.0
        %379 = vmatprep.subr.mxu0 0.0
        %380 = vmatpush1.msra.mxu0 0.0
        %381 = vmatprep.subr.mxu0 0.0
        %382 = vmatpush1.msra.mxu0 0.0
        %383 = vmatprep.subr.mxu0 0.0
        %384 = vmatpush1.msra.mxu0 0.0
        %385 = vmatprep.subr.mxu0 0.0
        %386 = vmatpush1.msra.mxu0 0.0
        %387 = vmatprep.subr.mxu0 0.0
        %388 = vmatpush1.msra.mxu0 0.0
        %389 = vmatprep.subr.mxu0 0.0
        %390 = vmatpush1.msra.mxu0 0.0
        %391 = vmatprep.subr.mxu0 0.0
        %392 = vmatpush1.msra.mxu0 0.0
        %393 = vmatprep.subr.mxu0 0.0
        %v394 = vand.u32 %v202, 4294901760
        %v395 = vsub.f32 %v202, %v394
        %396 = vmatpush1.msra.mxu0 %v395
        %397 = vmatprep.subr.mxu0 0.0
        %v398 = vand.u32 %v201, 4294901760
        %v399 = vsub.f32 %v201, %v398
        %400 = vmatpush1.msra.mxu0 %v399
        %401 = vmatprep.subr.mxu0 0.0
        %402 = vmatpush2.msra.mxu0 0.0
        %403 = vmatprep.subr.mxu0 0.0
        %404 = vmatpush2.msra.mxu0 0.0
        %405 = vmatprep.subr.mxu0 0.0
        %406 = vmatpush2.msra.mxu0 0.0
        %407 = vmatprep.subr.mxu0 0.0
        %408 = vmatpush2.msra.mxu0 0.0
        %409 = vmatprep.subr.mxu0 0.0
        %410 = vmatpush2.msra.mxu0 0.0
        %411 = vmatprep.subr.mxu0 0.0
        %412 = vmatpush2.msra.mxu0 0.0
        %413 = vmatprep.subr.mxu0 0.0
        %414 = vmatpush2.msra.mxu0 0.0
        %415 = vmatprep.subr.mxu0 0.0
        %416 = vmatpush2.msra.mxu0 0.0
        %417 = vmatprep.subr.mxu0 0.0
        %418 = vmatpush2.msra.mxu0 0.0
        %419 = vmatprep.subr.mxu0 0.0
        %420 = vmatpush2.msra.mxu0 0.0
        %421 = vmatprep.subr.mxu0 0.0
        %422 = vmatpush2.msra.mxu0 0.0
        %423 = vmatprep.subr.mxu0 0.0
        %424 = vmatpush2.msra.mxu0 0.0
        %425 = vmatprep.subr.mxu0 0.0
        %426 = vmatpush2.msra.mxu0 0.0
        %427 = vmatprep.subr.mxu0 0.0
        %428 = vmatpush2.msra.mxu0 0.0
        %429 = vmatprep.subr.mxu0 0.0
        %430 = vmatpush2.msra.mxu0 0.0
        %431 = vmatprep.subr.mxu0 0.0
        %432 = vmatpush2.msra.mxu0 0.0
        %433 = vmatprep.mubr.f32.mxu0 0.0
        %v434 = vand.u32 %v205, 4294901760
        %v435 = vsub.f32 %v205, %v434
        %436 = vmatmul.mubr.f32.gmra.mxu0 %v435
        %v437 = vpop.f32.mrf.mxu0
        %v438 = vadd.f32 %v362, %v437
        %v439 = vpop.f32.mrf.mxu0
        %440 = vdwg.mxu0
        %441 = vmatprep.subr.mxu0 0.0
        %442 = vmatpush1.msra.mxu0 0.0
        %443 = vmatprep.subr.mxu0 0.0
        %444 = vmatpush1.msra.mxu0 0.0
        %445 = vmatprep.subr.mxu0 0.0
        %446 = vmatpush1.msra.mxu0 0.0
        %447 = vmatprep.subr.mxu0 0.0
        %448 = vmatpush1.msra.mxu0 0.0
        %449 = vmatprep.subr.mxu0 0.0
        %450 = vmatpush1.msra.mxu0 0.0
        %451 = vmatprep.subr.mxu0 0.0
        %452 = vmatpush1.msra.mxu0 0.0
        %453 = vmatprep.subr.mxu0 0.0
        %454 = vmatpush1.msra.mxu0 0.0
        %455 = vmatprep.subr.mxu0 0.0
        %456 = vmatpush1.msra.mxu0 0.0
        %457 = vmatprep.subr.mxu0 0.0
        %458 = vmatpush1.msra.mxu0 0.0
        %459 = vmatprep.subr.mxu0 0.0
        %460 = vmatpush1.msra.mxu0 0.0
        %461 = vmatprep.subr.mxu0 0.0
        %462 = vmatpush1.msra.mxu0 0.0
        %463 = vmatprep.subr.mxu0 0.0
        %464 = vmatpush1.msra.mxu0 0.0
        %465 = vmatprep.subr.mxu0 0.0
        %466 = vmatpush1.msra.mxu0 0.0
        %467 = vmatprep.subr.mxu0 0.0
        %468 = vmatpush1.msra.mxu0 0.0
        %469 = vmatprep.subr.mxu0 0.0
        %v470 = vand.u32 %v202, 4294901760
        %471 = vmatpush1.msra.mxu0 %v470
        %472 = vmatprep.subr.mxu0 0.0
        %v473 = vand.u32 %v201, 4294901760
        %474 = vmatpush1.msra.mxu0 %v473
        %475 = vmatprep.subr.mxu0 0.0
        %476 = vmatpush2.msra.mxu0 0.0
        %477 = vmatprep.subr.mxu0 0.0
        %478 = vmatpush2.msra.mxu0 0.0
        %479 = vmatprep.subr.mxu0 0.0
        %480 = vmatpush2.msra.mxu0 0.0
        %481 = vmatprep.subr.mxu0 0.0
        %482 = vmatpush2.msra.mxu0 0.0
        %483 = vmatprep.subr.mxu0 0.0
        %484 = vmatpush2.msra.mxu0 0.0
        %485 = vmatprep.subr.mxu0 0.0
        %486 = vmatpush2.msra.mxu0 0.0
        %487 = vmatprep.subr.mxu0 0.0
        %488 = vmatpush2.msra.mxu0 0.0
        %489 = vmatprep.subr.mxu0 0.0
        %490 = vmatpush2.msra.mxu0 0.0
        %491 = vmatprep.subr.mxu0 0.0
        %492 = vmatpush2.msra.mxu0 0.0
        %493 = vmatprep.subr.mxu0 0.0
        %494 = vmatpush2.msra.mxu0 0.0
        %495 = vmatprep.subr.mxu0 0.0
        %496 = vmatpush2.msra.mxu0 0.0
        %497 = vmatprep.subr.mxu0 0.0
        %498 = vmatpush2.msra.mxu0 0.0
        %499 = vmatprep.subr.mxu0 0.0
        %500 = vmatpush2.msra.mxu0 0.0
        %501 = vmatprep.subr.mxu0 0.0
        %502 = vmatpush2.msra.mxu0 0.0
        %503 = vmatprep.subr.mxu0 0.0
        %504 = vmatpush2.msra.mxu0 0.0
        %505 = vmatprep.subr.mxu0 0.0
        %506 = vmatpush2.msra.mxu0 0.0
        %507 = vmatprep.mubr.f32.mxu0 0.0
        %v508 = vand.u32 %v205, 4294901760
        %v509 = vsub.f32 %v205, %v508
        %v510 = vand.u32 %v509, 4294901760
        %511 = vmatmul.mubr.f32.gmra.mxu0 %v510
        %v512 = vpop.f32.mrf.mxu0
        %v513 = vadd.f32 %v438, %v512
        %v514 = vpop.f32.mrf.mxu0
        %515 = vdwg.mxu0
        %516 = vmatprep.subr.mxu0 0.0
        %517 = vmatpush1.msra.mxu0 0.0
        %518 = vmatprep.subr.mxu0 0.0
        %519 = vmatpush1.msra.mxu0 0.0
        %520 = vmatprep.subr.mxu0 0.0
        %521 = vmatpush1.msra.mxu0 0.0
        %522 = vmatprep.subr.mxu0 0.0
        %523 = vmatpush1.msra.mxu0 0.0
        %524 = vmatprep.subr.mxu0 0.0
        %525 = vmatpush1.msra.mxu0 0.0
        %526 = vmatprep.subr.mxu0 0.0
        %527 = vmatpush1.msra.mxu0 0.0
        %528 = vmatprep.subr.mxu0 0.0
        %529 = vmatpush1.msra.mxu0 0.0
        %530 = vmatprep.subr.mxu0 0.0
        %531 = vmatpush1.msra.mxu0 0.0
        %532 = vmatprep.subr.mxu0 0.0
        %533 = vmatpush1.msra.mxu0 0.0
        %534 = vmatprep.subr.mxu0 0.0
        %535 = vmatpush1.msra.mxu0 0.0
        %536 = vmatprep.subr.mxu0 0.0
        %537 = vmatpush1.msra.mxu0 0.0
        %538 = vmatprep.subr.mxu0 0.0
        %539 = vmatpush1.msra.mxu0 0.0
        %540 = vmatprep.subr.mxu0 0.0
        %541 = vmatpush1.msra.mxu0 0.0
        %542 = vmatprep.subr.mxu0 0.0
        %543 = vmatpush1.msra.mxu0 0.0
        %544 = vmatprep.subr.mxu0 0.0
        %v545 = vand.u32 %v202, 4294901760
        %v546 = vsub.f32 %v202, %v545
        %v547 = vand.u32 %v546, 4294901760
        %548 = vmatpush1.msra.mxu0 %v547
        %549 = vmatprep.subr.mxu0 0.0
        %v550 = vand.u32 %v201, 4294901760
        %v551 = vsub.f32 %v201, %v550
        %v552 = vand.u32 %v551, 4294901760
        %553 = vmatpush1.msra.mxu0 %v552
        %554 = vmatprep.subr.mxu0 0.0
        %555 = vmatpush2.msra.mxu0 0.0
        %556 = vmatprep.subr.mxu0 0.0
        %557 = vmatpush2.msra.mxu0 0.0
        %558 = vmatprep.subr.mxu0 0.0
        %559 = vmatpush2.msra.mxu0 0.0
        %560 = vmatprep.subr.mxu0 0.0
        %561 = vmatpush2.msra.mxu0 0.0
        %562 = vmatprep.subr.mxu0 0.0
        %563 = vmatpush2.msra.mxu0 0.0
        %564 = vmatprep.subr.mxu0 0.0
        %565 = vmatpush2.msra.mxu0 0.0
        %566 = vmatprep.subr.mxu0 0.0
        %567 = vmatpush2.msra.mxu0 0.0
        %568 = vmatprep.subr.mxu0 0.0
        %569 = vmatpush2.msra.mxu0 0.0
        %570 = vmatprep.subr.mxu0 0.0
        %571 = vmatpush2.msra.mxu0 0.0
        %572 = vmatprep.subr.mxu0 0.0
        %573 = vmatpush2.msra.mxu0 0.0
        %574 = vmatprep.subr.mxu0 0.0
        %575 = vmatpush2.msra.mxu0 0.0
        %576 = vmatprep.subr.mxu0 0.0
        %577 = vmatpush2.msra.mxu0 0.0
        %578 = vmatprep.subr.mxu0 0.0
        %579 = vmatpush2.msra.mxu0 0.0
        %580 = vmatprep.subr.mxu0 0.0
        %581 = vmatpush2.msra.mxu0 0.0
        %582 = vmatprep.subr.mxu0 0.0
        %583 = vmatpush2.msra.mxu0 0.0
        %584 = vmatprep.subr.mxu0 0.0
        %585 = vmatpush2.msra.mxu0 0.0
        %586 = vmatprep.mubr.f32.mxu0 0.0
        %v587 = vand.u32 %v205, 4294901760
        %588 = vmatmul.mubr.f32.gmra.mxu0 %v587
        %v589 = vpop.f32.mrf.mxu0
        %v590 = vadd.f32 %v513, %v589
        %v591 = vpop.f32.mrf.mxu0
        %592 = vdwg.mxu0
        %593 = vmatprep.subr.mxu0 0.0
        %594 = vmatpush1.msra.mxu0 0.0
        %595 = vmatprep.subr.mxu0 0.0
        %596 = vmatpush1.msra.mxu0 0.0
        %597 = vmatprep.subr.mxu0 0.0
        %598 = vmatpush1.msra.mxu0 0.0
        %599 = vmatprep.subr.mxu0 0.0
        %600 = vmatpush1.msra.mxu0 0.0
        %601 = vmatprep.subr.mxu0 0.0
        %602 = vmatpush1.msra.mxu0 0.0
        %603 = vmatprep.subr.mxu0 0.0
        %604 = vmatpush1.msra.mxu0 0.0
        %605 = vmatprep.subr.mxu0 0.0
        %606 = vmatpush1.msra.mxu0 0.0
        %607 = vmatprep.subr.mxu0 0.0
        %608 = vmatpush1.msra.mxu0 0.0
        %609 = vmatprep.subr.mxu0 0.0
        %610 = vmatpush1.msra.mxu0 0.0
        %611 = vmatprep.subr.mxu0 0.0
        %612 = vmatpush1.msra.mxu0 0.0
        %613 = vmatprep.subr.mxu0 0.0
        %614 = vmatpush1.msra.mxu0 0.0
        %615 = vmatprep.subr.mxu0 0.0
        %616 = vmatpush1.msra.mxu0 0.0
        %617 = vmatprep.subr.mxu0 0.0
        %618 = vmatpush1.msra.mxu0 0.0
        %619 = vmatprep.subr.mxu0 0.0
        %620 = vmatpush1.msra.mxu0 0.0
        %621 = vmatprep.subr.mxu0 0.0
        %v622 = vand.u32 %v202, 4294901760
        %623 = vmatpush1.msra.mxu0 %v622
        %624 = vmatprep.subr.mxu0 0.0
        %v625 = vand.u32 %v201, 4294901760
        %626 = vmatpush1.msra.mxu0 %v625
        %627 = vmatprep.subr.mxu0 0.0
        %628 = vmatpush2.msra.mxu0 0.0
        %629 = vmatprep.subr.mxu0 0.0
        %630 = vmatpush2.msra.mxu0 0.0
        %631 = vmatprep.subr.mxu0 0.0
        %632 = vmatpush2.msra.mxu0 0.0
        %633 = vmatprep.subr.mxu0 0.0
        %634 = vmatpush2.msra.mxu0 0.0
        %635 = vmatprep.subr.mxu0 0.0
        %636 = vmatpush2.msra.mxu0 0.0
        %637 = vmatprep.subr.mxu0 0.0
        %638 = vmatpush2.msra.mxu0 0.0
        %639 = vmatprep.subr.mxu0 0.0
        %640 = vmatpush2.msra.mxu0 0.0
        %641 = vmatprep.subr.mxu0 0.0
        %642 = vmatpush2.msra.mxu0 0.0
        %643 = vmatprep.subr.mxu0 0.0
        %644 = vmatpush2.msra.mxu0 0.0
        %645 = vmatprep.subr.mxu0 0.0
        %646 = vmatpush2.msra.mxu0 0.0
        %647 = vmatprep.subr.mxu0 0.0
        %648 = vmatpush2.msra.mxu0 0.0
        %649 = vmatprep.subr.mxu0 0.0
        %650 = vmatpush2.msra.mxu0 0.0
        %651 = vmatprep.subr.mxu0 0.0
        %652 = vmatpush2.msra.mxu0 0.0
        %653 = vmatprep.subr.mxu0 0.0
        %654 = vmatpush2.msra.mxu0 0.0
        %655 = vmatprep.subr.mxu0 0.0
        %656 = vmatpush2.msra.mxu0 0.0
        %657 = vmatprep.subr.mxu0 0.0
        %658 = vmatpush2.msra.mxu0 0.0
        %659 = vmatprep.mubr.f32.mxu0 0.0
        %v660 = vand.u32 %v205, 4294901760
        %661 = vmatmul.mubr.f32.gmra.mxu0 %v660
        %v662 = vpop.f32.mrf.mxu0
        %v663 = vadd.f32 %v590, %v662
        %v664 = vpop.f32.mrf.mxu0
        %665 = vdwg.mxu0
        %666 = vst.msk [vmem:[%s194] sm:$0xff] %vm203, %v663
        %v668 = vsel %vm203, %v200, 0
        %670 = vmatprep.subr.mxu0 0.0
        %671 = vmatpush1.msra.mxu0 0.0
        %672 = vmatprep.subr.mxu0 0.0
        %673 = vmatpush1.msra.mxu0 0.0
        %674 = vmatprep.subr.mxu0 0.0
        %675 = vmatpush1.msra.mxu0 0.0
        %676 = vmatprep.subr.mxu0 0.0
        %677 = vmatpush1.msra.mxu0 0.0
        %678 = vmatprep.subr.mxu0 0.0
        %679 = vmatpush1.msra.mxu0 0.0
        %680 = vmatprep.subr.mxu0 0.0
        %681 = vmatpush1.msra.mxu0 0.0
        %682 = vmatprep.subr.mxu0 0.0
        %683 = vmatpush1.msra.mxu0 0.0
        %684 = vmatprep.subr.mxu0 0.0
        %685 = vmatpush1.msra.mxu0 0.0
        %686 = vmatprep.subr.mxu0 0.0
        %687 = vmatpush1.msra.mxu0 0.0
        %688 = vmatprep.subr.mxu0 0.0
        %689 = vmatpush1.msra.mxu0 0.0
        %690 = vmatprep.subr.mxu0 0.0
        %691 = vmatpush1.msra.mxu0 0.0
        %692 = vmatprep.subr.mxu0 0.0
        %693 = vmatpush1.msra.mxu0 0.0
        %694 = vmatprep.subr.mxu0 0.0
        %695 = vmatpush1.msra.mxu0 0.0
        %696 = vmatprep.subr.mxu0 0.0
        %697 = vmatpush1.msra.mxu0 0.0
        %698 = vmatprep.subr.mxu0 0.0
        %v699 = vand.u32 %v202, 4294901760
        %700 = vmatpush1.msra.mxu0 %v699
        %701 = vmatprep.subr.mxu0 0.0
        %v702 = vand.u32 %v201, 4294901760
        %703 = vmatpush1.msra.mxu0 %v702
        %704 = vmatprep.subr.mxu0 0.0
        %705 = vmatpush2.msra.mxu0 0.0
        %706 = vmatprep.subr.mxu0 0.0
        %707 = vmatpush2.msra.mxu0 0.0
        %708 = vmatprep.subr.mxu0 0.0
        %709 = vmatpush2.msra.mxu0 0.0
        %710 = vmatprep.subr.mxu0 0.0
        %711 = vmatpush2.msra.mxu0 0.0
        %712 = vmatprep.subr.mxu0 0.0
        %713 = vmatpush2.msra.mxu0 0.0
        %714 = vmatprep.subr.mxu0 0.0
        %715 = vmatpush2.msra.mxu0 0.0
        %716 = vmatprep.subr.mxu0 0.0
        %717 = vmatpush2.msra.mxu0 0.0
        %718 = vmatprep.subr.mxu0 0.0
        %719 = vmatpush2.msra.mxu0 0.0
        %720 = vmatprep.subr.mxu0 0.0
        %721 = vmatpush2.msra.mxu0 0.0
        %722 = vmatprep.subr.mxu0 0.0
        %723 = vmatpush2.msra.mxu0 0.0
        %724 = vmatprep.subr.mxu0 0.0
        %725 = vmatpush2.msra.mxu0 0.0
        %726 = vmatprep.subr.mxu0 0.0
        %727 = vmatpush2.msra.mxu0 0.0
        %728 = vmatprep.subr.mxu0 0.0
        %729 = vmatpush2.msra.mxu0 0.0
        %730 = vmatprep.subr.mxu0 0.0
        %731 = vmatpush2.msra.mxu0 0.0
        %732 = vmatprep.subr.mxu0 0.0
        %733 = vmatpush2.msra.mxu0 0.0
        %734 = vmatprep.subr.mxu0 0.0
        %735 = vmatpush2.msra.mxu0 0.0
        %736 = vmatprep.mubr.f32.mxu0 0.0
        %v737 = vand.u32 %v668, 4294901760
        %v738 = vsub.f32 %v668, %v737
        %v739 = vand.u32 %v738, 4294901760
        %v740 = vsub.f32 %v738, %v739
        %v741 = vand.u32 %v740, 4294901760
        %742 = vmatmul.mubr.f32.gmra.mxu0 %v741
        %v743 = vpop.f32.mrf.mxu0
        %v744 = vadd.f32 0.0, %v743
        %v745 = vpop.f32.mrf.mxu0
        %746 = vdwg.mxu0
        %747 = vmatprep.subr.mxu0 0.0
        %748 = vmatpush1.msra.mxu0 0.0
        %749 = vmatprep.subr.mxu0 0.0
        %750 = vmatpush1.msra.mxu0 0.0
        %751 = vmatprep.subr.mxu0 0.0
        %752 = vmatpush1.msra.mxu0 0.0
        %753 = vmatprep.subr.mxu0 0.0
        %754 = vmatpush1.msra.mxu0 0.0
        %755 = vmatprep.subr.mxu0 0.0
        %756 = vmatpush1.msra.mxu0 0.0
        %757 = vmatprep.subr.mxu0 0.0
        %758 = vmatpush1.msra.mxu0 0.0
        %759 = vmatprep.subr.mxu0 0.0
        %760 = vmatpush1.msra.mxu0 0.0
        %761 = vmatprep.subr.mxu0 0.0
        %762 = vmatpush1.msra.mxu0 0.0
        %763 = vmatprep.subr.mxu0 0.0
        %764 = vmatpush1.msra.mxu0 0.0
        %765 = vmatprep.subr.mxu0 0.0
        %766 = vmatpush1.msra.mxu0 0.0
        %767 = vmatprep.subr.mxu0 0.0
        %768 = vmatpush1.msra.mxu0 0.0
        %769 = vmatprep.subr.mxu0 0.0
        %770 = vmatpush1.msra.mxu0 0.0
        %771 = vmatprep.subr.mxu0 0.0
        %772 = vmatpush1.msra.mxu0 0.0
        %773 = vmatprep.subr.mxu0 0.0
        %774 = vmatpush1.msra.mxu0 0.0
        %775 = vmatprep.subr.mxu0 0.0
        %v776 = vand.u32 %v202, 4294901760
        %v777 = vsub.f32 %v202, %v776
        %v778 = vand.u32 %v777, 4294901760
        %v779 = vsub.f32 %v777, %v778
        %v780 = vand.u32 %v779, 4294901760
        %781 = vmatpush1.msra.mxu0 %v780
        %782 = vmatprep.subr.mxu0 0.0
        %v783 = vand.u32 %v201, 4294901760
        %v784 = vsub.f32 %v201, %v783
        %v785 = vand.u32 %v784, 4294901760
        %v786 = vsub.f32 %v784, %v785
        %v787 = vand.u32 %v786, 4294901760
        %788 = vmatpush1.msra.mxu0 %v787
        %789 = vmatprep.subr.mxu0 0.0
        %790 = vmatpush2.msra.mxu0 0.0
        %791 = vmatprep.subr.mxu0 0.0
        %792 = vmatpush2.msra.mxu0 0.0
        %793 = vmatprep.subr.mxu0 0.0
        %794 = vmatpush2.msra.mxu0 0.0
        %795 = vmatprep.subr.mxu0 0.0
        %796 = vmatpush2.msra.mxu0 0.0
        %797 = vmatprep.subr.mxu0 0.0
        %798 = vmatpush2.msra.mxu0 0.0
        %799 = vmatprep.subr.mxu0 0.0
        %800 = vmatpush2.msra.mxu0 0.0
        %801 = vmatprep.subr.mxu0 0.0
        %802 = vmatpush2.msra.mxu0 0.0
        %803 = vmatprep.subr.mxu0 0.0
        %804 = vmatpush2.msra.mxu0 0.0
        %805 = vmatprep.subr.mxu0 0.0
        %806 = vmatpush2.msra.mxu0 0.0
        %807 = vmatprep.subr.mxu0 0.0
        %808 = vmatpush2.msra.mxu0 0.0
        %809 = vmatprep.subr.mxu0 0.0
        %810 = vmatpush2.msra.mxu0 0.0
        %811 = vmatprep.subr.mxu0 0.0
        %812 = vmatpush2.msra.mxu0 0.0
        %813 = vmatprep.subr.mxu0 0.0
        %814 = vmatpush2.msra.mxu0 0.0
        %815 = vmatprep.subr.mxu0 0.0
        %816 = vmatpush2.msra.mxu0 0.0
        %817 = vmatprep.subr.mxu0 0.0
        %818 = vmatpush2.msra.mxu0 0.0
        %819 = vmatprep.subr.mxu0 0.0
        %820 = vmatpush2.msra.mxu0 0.0
        %821 = vmatprep.mubr.f32.mxu0 0.0
        %v822 = vand.u32 %v668, 4294901760
        %823 = vmatmul.mubr.f32.gmra.mxu0 %v822
        %v824 = vpop.f32.mrf.mxu0
        %v825 = vadd.f32 %v744, %v824
        %v826 = vpop.f32.mrf.mxu0
        %827 = vdwg.mxu0
        %828 = vmatprep.subr.mxu0 0.0
        %829 = vmatpush1.msra.mxu0 0.0
        %830 = vmatprep.subr.mxu0 0.0
        %831 = vmatpush1.msra.mxu0 0.0
        %832 = vmatprep.subr.mxu0 0.0
        %833 = vmatpush1.msra.mxu0 0.0
        %834 = vmatprep.subr.mxu0 0.0
        %835 = vmatpush1.msra.mxu0 0.0
        %836 = vmatprep.subr.mxu0 0.0
        %837 = vmatpush1.msra.mxu0 0.0
        %838 = vmatprep.subr.mxu0 0.0
        %839 = vmatpush1.msra.mxu0 0.0
        %840 = vmatprep.subr.mxu0 0.0
        %841 = vmatpush1.msra.mxu0 0.0
        %842 = vmatprep.subr.mxu0 0.0
        %843 = vmatpush1.msra.mxu0 0.0
        %844 = vmatprep.subr.mxu0 0.0
        %845 = vmatpush1.msra.mxu0 0.0
        %846 = vmatprep.subr.mxu0 0.0
        %847 = vmatpush1.msra.mxu0 0.0
        %848 = vmatprep.subr.mxu0 0.0
        %849 = vmatpush1.msra.mxu0 0.0
        %850 = vmatprep.subr.mxu0 0.0
        %851 = vmatpush1.msra.mxu0 0.0
        %852 = vmatprep.subr.mxu0 0.0
        %853 = vmatpush1.msra.mxu0 0.0
        %854 = vmatprep.subr.mxu0 0.0
        %855 = vmatpush1.msra.mxu0 0.0
        %856 = vmatprep.subr.mxu0 0.0
        %v857 = vand.u32 %v202, 4294901760
        %v858 = vsub.f32 %v202, %v857
        %859 = vmatpush1.msra.mxu0 %v858
        %860 = vmatprep.subr.mxu0 0.0
        %v861 = vand.u32 %v201, 4294901760
        %v862 = vsub.f32 %v201, %v861
        %863 = vmatpush1.msra.mxu0 %v862
        %864 = vmatprep.subr.mxu0 0.0
        %865 = vmatpush2.msra.mxu0 0.0
        %866 = vmatprep.subr.mxu0 0.0
        %867 = vmatpush2.msra.mxu0 0.0
        %868 = vmatprep.subr.mxu0 0.0
        %869 = vmatpush2.msra.mxu0 0.0
        %870 = vmatprep.subr.mxu0 0.0
        %871 = vmatpush2.msra.mxu0 0.0
        %872 = vmatprep.subr.mxu0 0.0
        %873 = vmatpush2.msra.mxu0 0.0
        %874 = vmatprep.subr.mxu0 0.0
        %875 = vmatpush2.msra.mxu0 0.0
        %876 = vmatprep.subr.mxu0 0.0
        %877 = vmatpush2.msra.mxu0 0.0
        %878 = vmatprep.subr.mxu0 0.0
        %879 = vmatpush2.msra.mxu0 0.0
        %880 = vmatprep.subr.mxu0 0.0
        %881 = vmatpush2.msra.mxu0 0.0
        %882 = vmatprep.subr.mxu0 0.0
        %883 = vmatpush2.msra.mxu0 0.0
        %884 = vmatprep.subr.mxu0 0.0
        %885 = vmatpush2.msra.mxu0 0.0
        %886 = vmatprep.subr.mxu0 0.0
        %887 = vmatpush2.msra.mxu0 0.0
        %888 = vmatprep.subr.mxu0 0.0
        %889 = vmatpush2.msra.mxu0 0.0
        %890 = vmatprep.subr.mxu0 0.0
        %891 = vmatpush2.msra.mxu0 0.0
        %892 = vmatprep.subr.mxu0 0.0
        %893 = vmatpush2.msra.mxu0 0.0
        %894 = vmatprep.subr.mxu0 0.0
        %895 = vmatpush2.msra.mxu0 0.0
        %896 = vmatprep.mubr.f32.mxu0 0.0
        %v897 = vand.u32 %v668, 4294901760
        %v898 = vsub.f32 %v668, %v897
        %899 = vmatmul.mubr.f32.gmra.mxu0 %v898
        %v900 = vpop.f32.mrf.mxu0
        %v901 = vadd.f32 %v825, %v900
        %v902 = vpop.f32.mrf.mxu0
        %903 = vdwg.mxu0
        %904 = vmatprep.subr.mxu0 0.0
        %905 = vmatpush1.msra.mxu0 0.0
        %906 = vmatprep.subr.mxu0 0.0
        %907 = vmatpush1.msra.mxu0 0.0
        %908 = vmatprep.subr.mxu0 0.0
        %909 = vmatpush1.msra.mxu0 0.0
        %910 = vmatprep.subr.mxu0 0.0
        %911 = vmatpush1.msra.mxu0 0.0
        %912 = vmatprep.subr.mxu0 0.0
        %913 = vmatpush1.msra.mxu0 0.0
        %914 = vmatprep.subr.mxu0 0.0
        %915 = vmatpush1.msra.mxu0 0.0
        %916 = vmatprep.subr.mxu0 0.0
        %917 = vmatpush1.msra.mxu0 0.0
        %918 = vmatprep.subr.mxu0 0.0
        %919 = vmatpush1.msra.mxu0 0.0
        %920 = vmatprep.subr.mxu0 0.0
        %921 = vmatpush1.msra.mxu0 0.0
        %922 = vmatprep.subr.mxu0 0.0
        %923 = vmatpush1.msra.mxu0 0.0
        %924 = vmatprep.subr.mxu0 0.0
        %925 = vmatpush1.msra.mxu0 0.0
        %926 = vmatprep.subr.mxu0 0.0
        %927 = vmatpush1.msra.mxu0 0.0
        %928 = vmatprep.subr.mxu0 0.0
        %929 = vmatpush1.msra.mxu0 0.0
        %930 = vmatprep.subr.mxu0 0.0
        %931 = vmatpush1.msra.mxu0 0.0
        %932 = vmatprep.subr.mxu0 0.0
        %v933 = vand.u32 %v202, 4294901760
        %934 = vmatpush1.msra.mxu0 %v933
        %935 = vmatprep.subr.mxu0 0.0
        %v936 = vand.u32 %v201, 4294901760
        %937 = vmatpush1.msra.mxu0 %v936
        %938 = vmatprep.subr.mxu0 0.0
        %939 = vmatpush2.msra.mxu0 0.0
        %940 = vmatprep.subr.mxu0 0.0
        %941 = vmatpush2.msra.mxu0 0.0
        %942 = vmatprep.subr.mxu0 0.0
        %943 = vmatpush2.msra.mxu0 0.0
        %944 = vmatprep.subr.mxu0 0.0
        %945 = vmatpush2.msra.mxu0 0.0
        %946 = vmatprep.subr.mxu0 0.0
        %947 = vmatpush2.msra.mxu0 0.0
        %948 = vmatprep.subr.mxu0 0.0
        %949 = vmatpush2.msra.mxu0 0.0
        %950 = vmatprep.subr.mxu0 0.0
        %951 = vmatpush2.msra.mxu0 0.0
        %952 = vmatprep.subr.mxu0 0.0
        %953 = vmatpush2.msra.mxu0 0.0
        %954 = vmatprep.subr.mxu0 0.0
        %955 = vmatpush2.msra.mxu0 0.0
        %956 = vmatprep.subr.mxu0 0.0
        %957 = vmatpush2.msra.mxu0 0.0
        %958 = vmatprep.subr.mxu0 0.0
        %959 = vmatpush2.msra.mxu0 0.0
        %960 = vmatprep.subr.mxu0 0.0
        %961 = vmatpush2.msra.mxu0 0.0
        %962 = vmatprep.subr.mxu0 0.0
        %963 = vmatpush2.msra.mxu0 0.0
        %964 = vmatprep.subr.mxu0 0.0
        %965 = vmatpush2.msra.mxu0 0.0
        %966 = vmatprep.subr.mxu0 0.0
        %967 = vmatpush2.msra.mxu0 0.0
        %968 = vmatprep.subr.mxu0 0.0
        %969 = vmatpush2.msra.mxu0 0.0
        %970 = vmatprep.mubr.f32.mxu0 0.0
        %v971 = vand.u32 %v668, 4294901760
        %v972 = vsub.f32 %v668, %v971
        %v973 = vand.u32 %v972, 4294901760
        %974 = vmatmul.mubr.f32.gmra.mxu0 %v973
        %v975 = vpop.f32.mrf.mxu0
        %v976 = vadd.f32 %v901, %v975
        %v977 = vpop.f32.mrf.mxu0
        %978 = vdwg.mxu0
        %979 = vmatprep.subr.mxu0 0.0
        %980 = vmatpush1.msra.mxu0 0.0
        %981 = vmatprep.subr.mxu0 0.0
        %982 = vmatpush1.msra.mxu0 0.0
        %983 = vmatprep.subr.mxu0 0.0
        %984 = vmatpush1.msra.mxu0 0.0
        %985 = vmatprep.subr.mxu0 0.0
        %986 = vmatpush1.msra.mxu0 0.0
        %987 = vmatprep.subr.mxu0 0.0
        %988 = vmatpush1.msra.mxu0 0.0
        %989 = vmatprep.subr.mxu0 0.0
        %990 = vmatpush1.msra.mxu0 0.0
        %991 = vmatprep.subr.mxu0 0.0
        %992 = vmatpush1.msra.mxu0 0.0
        %993 = vmatprep.subr.mxu0 0.0
        %994 = vmatpush1.msra.mxu0 0.0
        %995 = vmatprep.subr.mxu0 0.0
        %996 = vmatpush1.msra.mxu0 0.0
        %997 = vmatprep.subr.mxu0 0.0
        %998 = vmatpush1.msra.mxu0 0.0
        %999 = vmatprep.subr.mxu0 0.0
        %1000 = vmatpush1.msra.mxu0 0.0
        %1001 = vmatprep.subr.mxu0 0.0
        %1002 = vmatpush1.msra.mxu0 0.0
        %1003 = vmatprep.subr.mxu0 0.0
        %1004 = vmatpush1.msra.mxu0 0.0
        %1005 = vmatprep.subr.mxu0 0.0
        %1006 = vmatpush1.msra.mxu0 0.0
        %1007 = vmatprep.subr.mxu0 0.0
        %v1008 = vand.u32 %v202, 4294901760
        %v1009 = vsub.f32 %v202, %v1008
        %v1010 = vand.u32 %v1009, 4294901760
        %1011 = vmatpush1.msra.mxu0 %v1010
        %1012 = vmatprep.subr.mxu0 0.0
        %v1013 = vand.u32 %v201, 4294901760
        %v1014 = vsub.f32 %v201, %v1013
        %v1015 = vand.u32 %v1014, 4294901760
        %1016 = vmatpush1.msra.mxu0 %v1015
        %1017 = vmatprep.subr.mxu0 0.0
        %1018 = vmatpush2.msra.mxu0 0.0
        %1019 = vmatprep.subr.mxu0 0.0
        %1020 = vmatpush2.msra.mxu0 0.0
        %1021 = vmatprep.subr.mxu0 0.0
        %1022 = vmatpush2.msra.mxu0 0.0
        %1023 = vmatprep.subr.mxu0 0.0
        %1024 = vmatpush2.msra.mxu0 0.0
        %1025 = vmatprep.subr.mxu0 0.0
        %1026 = vmatpush2.msra.mxu0 0.0
        %1027 = vmatprep.subr.mxu0 0.0
        %1028 = vmatpush2.msra.mxu0 0.0
        %1029 = vmatprep.subr.mxu0 0.0
        %1030 = vmatpush2.msra.mxu0 0.0
        %1031 = vmatprep.subr.mxu0 0.0
        %1032 = vmatpush2.msra.mxu0 0.0
        %1033 = vmatprep.subr.mxu0 0.0
        %1034 = vmatpush2.msra.mxu0 0.0
        %1035 = vmatprep.subr.mxu0 0.0
        %1036 = vmatpush2.msra.mxu0 0.0
        %1037 = vmatprep.subr.mxu0 0.0
        %1038 = vmatpush2.msra.mxu0 0.0
        %1039 = vmatprep.subr.mxu0 0.0
        %1040 = vmatpush2.msra.mxu0 0.0
        %1041 = vmatprep.subr.mxu0 0.0
        %1042 = vmatpush2.msra.mxu0 0.0
        %1043 = vmatprep.subr.mxu0 0.0
        %1044 = vmatpush2.msra.mxu0 0.0
        %1045 = vmatprep.subr.mxu0 0.0
        %1046 = vmatpush2.msra.mxu0 0.0
        %1047 = vmatprep.subr.mxu0 0.0
        %1048 = vmatpush2.msra.mxu0 0.0
        %1049 = vmatprep.mubr.f32.mxu0 0.0
        %v1050 = vand.u32 %v668, 4294901760
        %1051 = vmatmul.mubr.f32.gmra.mxu0 %v1050
        %v1052 = vpop.f32.mrf.mxu0
        %v1053 = vadd.f32 %v976, %v1052
        %v1054 = vpop.f32.mrf.mxu0
        %1055 = vdwg.mxu0
        %1056 = vmatprep.subr.mxu0 0.0
        %1057 = vmatpush1.msra.mxu0 0.0
        %1058 = vmatprep.subr.mxu0 0.0
        %1059 = vmatpush1.msra.mxu0 0.0
        %1060 = vmatprep.subr.mxu0 0.0
        %1061 = vmatpush1.msra.mxu0 0.0
        %1062 = vmatprep.subr.mxu0 0.0
        %1063 = vmatpush1.msra.mxu0 0.0
        %1064 = vmatprep.subr.mxu0 0.0
        %1065 = vmatpush1.msra.mxu0 0.0
        %1066 = vmatprep.subr.mxu0 0.0
        %1067 = vmatpush1.msra.mxu0 0.0
        %1068 = vmatprep.subr.mxu0 0.0
        %1069 = vmatpush1.msra.mxu0 0.0
        %1070 = vmatprep.subr.mxu0 0.0
        %1071 = vmatpush1.msra.mxu0 0.0
        %1072 = vmatprep.subr.mxu0 0.0
        %1073 = vmatpush1.msra.mxu0 0.0
        %1074 = vmatprep.subr.mxu0 0.0
        %1075 = vmatpush1.msra.mxu0 0.0
        %1076 = vmatprep.subr.mxu0 0.0
        %1077 = vmatpush1.msra.mxu0 0.0
        %1078 = vmatprep.subr.mxu0 0.0
        %1079 = vmatpush1.msra.mxu0 0.0
        %1080 = vmatprep.subr.mxu0 0.0
        %1081 = vmatpush1.msra.mxu0 0.0
        %1082 = vmatprep.subr.mxu0 0.0
        %1083 = vmatpush1.msra.mxu0 0.0
        %1084 = vmatprep.subr.mxu0 0.0
        %v1085 = vand.u32 %v202, 4294901760
        %1086 = vmatpush1.msra.mxu0 %v1085
        %1087 = vmatprep.subr.mxu0 0.0
        %v1088 = vand.u32 %v201, 4294901760
        %1089 = vmatpush1.msra.mxu0 %v1088
        %1090 = vmatprep.subr.mxu0 0.0
        %1091 = vmatpush2.msra.mxu0 0.0
        %1092 = vmatprep.subr.mxu0 0.0
        %1093 = vmatpush2.msra.mxu0 0.0
        %1094 = vmatprep.subr.mxu0 0.0
        %1095 = vmatpush2.msra.mxu0 0.0
        %1096 = vmatprep.subr.mxu0 0.0
        %1097 = vmatpush2.msra.mxu0 0.0
        %1098 = vmatprep.subr.mxu0 0.0
        %1099 = vmatpush2.msra.mxu0 0.0
        %1100 = vmatprep.subr.mxu0 0.0
        %1101 = vmatpush2.msra.mxu0 0.0
        %1102 = vmatprep.subr.mxu0 0.0
        %1103 = vmatpush2.msra.mxu0 0.0
        %1104 = vmatprep.subr.mxu0 0.0
        %1105 = vmatpush2.msra.mxu0 0.0
        %1106 = vmatprep.subr.mxu0 0.0
        %1107 = vmatpush2.msra.mxu0 0.0
        %1108 = vmatprep.subr.mxu0 0.0
        %1109 = vmatpush2.msra.mxu0 0.0
        %1110 = vmatprep.subr.mxu0 0.0
        %1111 = vmatpush2.msra.mxu0 0.0
        %1112 = vmatprep.subr.mxu0 0.0
        %1113 = vmatpush2.msra.mxu0 0.0
        %1114 = vmatprep.subr.mxu0 0.0
        %1115 = vmatpush2.msra.mxu0 0.0
        %1116 = vmatprep.subr.mxu0 0.0
        %1117 = vmatpush2.msra.mxu0 0.0
        %1118 = vmatprep.subr.mxu0 0.0
        %1119 = vmatpush2.msra.mxu0 0.0
        %1120 = vmatprep.subr.mxu0 0.0
        %1121 = vmatpush2.msra.mxu0 0.0
        %1122 = vmatprep.mubr.f32.mxu0 0.0
        %v1123 = vand.u32 %v668, 4294901760
        %1124 = vmatmul.mubr.f32.gmra.mxu0 %v1123
        %v1125 = vpop.f32.mrf.mxu0
        %v1126 = vadd.f32 %v1053, %v1125
        %v1127 = vpop.f32.mrf.mxu0
        %1128 = vdwg.mxu0
        %s1129 = scalar_lea.vmem %s194, 8 [#allocation7]
        %1130 = vst.msk [vmem:[%s1129] sm:$0xff] %vm203, %v1126
        %s1131 = sand.u32 %s91, 1
        %s1132 = scalar_lea.sflag [#allocation4], %s1131
        %s1133 = sand.u32 %s91, 1
        %s1134 = smul.addr %s1133, 16
        %s1135 = scalar_lea.vmem [#allocation7], %s1134
        // Predicated region
        $region37: #{tpu_custom_call.1} parent=27 // pred_check
          %p1136 = pneg %p101
        $region38: #{tpu_custom_call.1} parent=27 // pred_check_branch
          %1138 = sbr.rel (%p1136) target = $region40
        $region39: #{tpu_custom_call.1} parent=27 // pred_region
          %s1140 = ssub.s32 256, 256
          %1141 = vsyncadd %s1132, %s1140
          %s1142 = smul.addr %s24, 2
          %s1143 = sadd.s32 %s25, %s1142
          %s1144 = smul.addr %s1143, 128
          %s1145 = scalar_lea.hbm %s2, %s1144
          %s1146 = sshll.u32 %s1135, 4
          %s1147 = int_to_ptr.vmem [resolvable:$true] %s1146
          %1152 = dma.vmem_to_hbm [thread:$0]  %s1147, 256, %s1145, %s1132, 128, 128, 8
        $region40: #{tpu_custom_call.1} parent=27 // pred_fallthru
          _
      $region28: #{tpu_custom_call.1} parent=5 // pred_fallthru
        _
      %p1153 = scmp.le.s32.totalorder 2, %s15
      // Predicated region
      $region41: #{tpu_custom_call.1} parent=5 // pred_check
        %p1154 = pneg %p1153
      $region42: #{tpu_custom_call.1} parent=5 // pred_check_branch
        %1156 = sbr.rel (%p1154) target = $region44
      $region43: #{tpu_custom_call.1} parent=5 // pred_region
        %s1157 = ssub.s32 %s15, 2
        // Predicated region
        $region45: #{tpu_custom_call.1} parent=43 // pred_check
          %p1158 = pneg %p107
        $region46: #{tpu_custom_call.1} parent=43 // pred_check_branch
          %1160 = sbr.rel (%p1158) target = $region48
        $region47: #{tpu_custom_call.1} parent=43 // pred_region
          %s1161 = sand.u32 %s92, 1
          %s1162 = scalar_lea.sflag [#allocation4], %s1161
          %s1163 = sand.u32 %s92, 1
          %s1164 = smul.addr %s1163, 16
          %s1165 = scalar_lea.vmem [#allocation7], %s1164
          %1166 = dma.done %s1162, 256
        $region48: #{tpu_custom_call.1} parent=43 // pred_fallthru
          _
      $region44: #{tpu_custom_call.1} parent=5 // pred_fallthru
        _
    $region6: #{tpu_custom_call.1} parent=1 // loop_footer
      %s19 = sadd.s32 1, %s15
    $region7: #{tpu_custom_call.1} parent=1 // loop_footer_branch
      %14 = sbr.rel target = $region3
    $region8: #{tpu_custom_call.1} parent=1 // loop_exit
      _
    %1167 = vsyncpa [#allocation3], 1
    %s1168 = scalar_lea.sflag [#allocation3], 1
    %1169 = vsyncpa %s1168, 1
    %1170 = vsyncpa [#allocation6], 1
    %1171 = vsyncpa [#allocation4], 1
    %s1172 = scalar_lea.sflag [#allocation4], 1
    %1173 = vsyncpa %s1172, 1

</llo_original>
